<compile_context>
chip_gen: v7x
topology: tpu7x:2x2x1
jax: 0.10.0
libtpu: 0.0.40
codegen_flags: <defaults>
</compile_context>

<pallas_src>
import jax
import jax.numpy as jnp
from jax.experimental import pallas as pl
from jax.experimental.pallas import tpu as pltpu


def _round_up(n, m):
    return ((n + m - 1) // m) * m


def _pick_tile_m(batch):
    """Rows per grid step: big tiles, but keep >=2 steps for v7x megacore."""
    mp8 = _round_up(batch, 8)          # sublane granularity
    tile = min(512, mp8)               # 512-row tiles amortize grid overhead
    # v7x has 2 TCs sharing the parallel grid axis: avoid a 1-step grid when
    # there is enough work to split.
    if mp8 > 256 and pl.cdiv(mp8, tile) < 2:
        tile = _round_up(pl.cdiv(mp8, 2), 8)
    return tile


# ----------------------------------------------------------------------------
# Pallas kernel: fused 2-layer MLP tile   y = relu(x @ W1 + b1) @ W2 + b2
#   x tile:   (TILE_M, in_f)   f32  (streamed; cast to bf16 in-kernel)
#   W1, W2:   (in_f, H), (H, out_f) bf16   (resident in VMEM across the grid)
#   b1, b2:   (1, H), (1, out_f)    f32    (resident)
#   out tile: (TILE_M, out_f)  bf16 (narrow writeback; f32 MXU accumulation)
# ----------------------------------------------------------------------------
def _mlp_kernel(x_ref, w1_ref, b1_ref, w2_ref, b2_ref, o_ref):
    x = x_ref[...].astype(jnp.bfloat16)                       # VPU cast, in-VMEM
    h = jnp.dot(x, w1_ref[...], preferred_element_type=jnp.float32) + b1_ref[...]
    h = jnp.maximum(h, 0.0)
    y = jnp.dot(h.astype(jnp.bfloat16), w2_ref[...],
                preferred_element_type=jnp.float32) + b2_ref[...]
    o_ref[...] = y.astype(o_ref.dtype)                         # bf16 store


def mlp_forward(x, w1, b1, w2, b2):
    """Inner-module forward; all compute happens in the fused Pallas kernel.

    No feature-dim padding: every weight/bias block equals its full array
    shape, and x / out use their logical last dims (allowed by the BlockSpec
    full-dim rule).  Only the batch dim is padded (with zeros) to a multiple
    of the chosen row tile; padded rows are sliced off afterwards.
    """
    batch, in_f = x.shape
    hidden = w1.shape[1]
    out_f = w2.shape[1]

    tile_m = _pick_tile_m(batch)
    mp = _round_up(batch, tile_m)
    if mp != batch:
        x = jnp.pad(x, ((0, mp - batch), (0, 0)))

    grid = (mp // tile_m,)

    # Explicit VMEM accounting (double-buffered streamed tiles + resident
    # weights + f32 hidden scratch), with generous headroom.
    x_bytes = tile_m * in_f * 4
    o_bytes = tile_m * out_f * 2
    w_bytes = (in_f * hidden + hidden * out_f) * 2 + (hidden + out_f) * 4
    h_bytes = tile_m * hidden * 4
    footprint = 2 * (x_bytes + o_bytes) + 2 * w_bytes + h_bytes
    vmem_limit = min(64 * 1024 * 1024, max(8 * 1024 * 1024, 4 * footprint))

    out = pl.pallas_call(
        _mlp_kernel,
        out_shape=jax.ShapeDtypeStruct((mp, out_f), jnp.bfloat16),
        grid_spec=pltpu.PrefetchScalarGridSpec(
            num_scalar_prefetch=0,
            grid=grid,
            in_specs=[
                # activation tile streams along the batch grid axis
                pl.BlockSpec((tile_m, in_f), lambda i: (i, 0)),
                # weights / biases: resident blocks (same index every step)
                pl.BlockSpec((in_f, hidden), lambda i: (0, 0)),
                pl.BlockSpec((1, hidden), lambda i: (0, 0)),
                pl.BlockSpec((hidden, out_f), lambda i: (0, 0)),
                pl.BlockSpec((1, out_f), lambda i: (0, 0)),
            ],
            out_specs=pl.BlockSpec((tile_m, out_f), lambda i: (i, 0)),
        ),
        compiler_params=pltpu.CompilerParams(
            # batch tiles are independent -> shard across TCs on v7x megacore
            dimension_semantics=("parallel",),
            vmem_limit_bytes=vmem_limit,
        ),
    )(x, w1, b1, w2, b2)

    if mp != batch:
        out = out[:batch]
    return out


# ----------------------------------------------------------------------------
# Inner module (deterministic parameters) + LegacyTracedModule wrapper
# ----------------------------------------------------------------------------
class InnerMLP:
    """Stand-in for the arbitrary `inner` nn.Module being traced."""

    def __init__(self, key, in_features=32, hidden=64, out_features=32):
        k1, k2, k3, k4 = jax.random.split(key, 4)
        scale1 = 1.0 / jnp.sqrt(in_features)
        scale2 = 1.0 / jnp.sqrt(hidden)
        # f32 "master" params; bf16 copies made once at init (no per-call cast).
        self.w1 = jax.random.normal(k1, (in_features, hidden), jnp.float32) * scale1
        self.b1 = jax.random.normal(k2, (1, hidden), jnp.float32) * scale1
        self.w2 = jax.random.normal(k3, (hidden, out_features), jnp.float32) * scale2
        self.b2 = jax.random.normal(k4, (1, out_features), jnp.float32) * scale2
        self.w1_bf16 = self.w1.astype(jnp.bfloat16)
        self.w2_bf16 = self.w2.astype(jnp.bfloat16)

    def __call__(self, x):
        # TODO(synk): bf16 weights / bf16 output deviate from torch's f32
        # nn.Linear; keep f32 operands here if exact f32 parity is required.
        return mlp_forward(x, self.w1_bf16, self.b1, self.w2_bf16, self.b2)


class LegacyTracedModule:
    """JAX analog of torch.jit.LegacyTracedModule.

    forward(*args) -> (trace, out): `trace` is the cached jaxpr of the inner
    forward (the analog of the torch._C tracer graph) and `out` is the result
    of a single jitted execution of the inner module (one compiled dispatch,
    no re-trace / double execution per call).
    """

    def __init__(self, inner):
        self.inner = inner
        self._inner_fn = lambda *a: self.inner(*a)
        self._jit_inner = jax.jit(self._inner_fn)
        # TODO(synk): torch's tracer records module params as explicit trace
        # inputs; here they are closed-over constants of the jaxpr.
        self._trace_cache = {}

    def forward(self, *args):
        key = tuple((tuple(a.shape), str(a.dtype)) for a in args)
        trace = self._trace_cache.get(key)
        if trace is None:
            # torch._C._tracer_enter / _tracer_exit -> JAX tracing (jaxpr),
            # done once per input signature and cached.
            trace = jax.make_jaxpr(self._inner_fn)(*args)
            self._trace_cache[key] = trace
        out = self._jit_inner(*args)
        return trace, out

    __call__ = forward


if __name__ == "__main__":
    key = jax.random.PRNGKey(0)
    k_param, k_in = jax.random.split(key)

    batch, in_features, hidden, out_features = 8, 32, 64, 32
    inner = InnerMLP(k_param, in_features=in_features, hidden=hidden,
                     out_features=out_features)
    module = LegacyTracedModule(inner)

    x = jax.random.normal(k_in, (batch, in_features), jnp.float32)

    trace, out = module(x)          # traces + compiles once
    trace2, out2 = module(x)        # cached jaxpr + cached executable
    out = jax.block_until_ready(out)
    out2 = jax.block_until_ready(out2)

    # Pure-JAX reference with the identical bf16-weight / f32-acc recipe.
    xb = x.astype(jnp.bfloat16)
    h_ref = jnp.maximum(
        jnp.dot(xb, inner.w1_bf16, preferred_element_type=jnp.float32) + inner.b1,
        0.0)
    ref = (jnp.dot(h_ref.astype(jnp.bfloat16), inner.w2_bf16,
                   preferred_element_type=jnp.float32) + inner.b2)

    assert out.shape == (batch, out_features)
    assert out.dtype == jnp.bfloat16
    assert jnp.allclose(out.astype(jnp.float32), out2.astype(jnp.float32))
    assert jnp.allclose(out.astype(jnp.float32), ref, atol=3e-2, rtol=3e-2)
    assert trace is trace2          # jaxpr cache hit on second call

    print("KERNEL_OK")
</pallas_src>

<mosaic_0001>
module attributes {stable_mosaic.version = 11 : i64} {
  func.func @_mlp_kernel(%arg0: i32, %arg1: memref<8x32xf32, #tpu.memory_space<vmem>>, %arg2: memref<32x64xbf16, #tpu.memory_space<vmem>>, %arg3: memref<1x64xf32, #tpu.memory_space<vmem>>, %arg4: memref<64x32xbf16, #tpu.memory_space<vmem>>, %arg5: memref<1x32xf32, #tpu.memory_space<vmem>>, %arg6: memref<8x32xbf16, #tpu.memory_space<vmem>>) attributes {dimension_semantics = [#tpu.dimension_semantics<parallel>], iteration_bounds = array<i64: 1>, scalar_prefetch = 0 : i64, scratch_operands = 0 : i64, tpu.core_type = #tpu.core_type<tc>, window_params = [{transform_indices = @transform_0, window_bounds = array<i64: 8, 32>}, {pipeline_mode = #tpu.pipeline_mode<synchronous>, transform_indices = @transform_1, window_bounds = array<i64: 32, 64>}, {pipeline_mode = #tpu.pipeline_mode<synchronous>, transform_indices = @transform_2, window_bounds = array<i64: 1, 64>}, {pipeline_mode = #tpu.pipeline_mode<synchronous>, transform_indices = @transform_3, window_bounds = array<i64: 64, 32>}, {pipeline_mode = #tpu.pipeline_mode<synchronous>, transform_indices = @transform_4, window_bounds = array<i64: 1, 32>}, {transform_indices = @transform_5, window_bounds = array<i64: 8, 32>}]} {
    %c0 = arith.constant 0 : index
    %c0_0 = arith.constant 0 : index
    %0 = vector.load %arg1[%c0, %c0_0] : memref<8x32xf32, #tpu.memory_space<vmem>>, vector<8x32xf32>
    %1 = arith.truncf %0 : vector<8x32xf32> to vector<8x32xbf16>
    %c0_1 = arith.constant 0 : index
    %c0_2 = arith.constant 0 : index
    %2 = vector.load %arg2[%c0_1, %c0_2] : memref<32x64xbf16, #tpu.memory_space<vmem>>, vector<32x64xbf16>
    %cst = arith.constant dense<0.000000e+00> : vector<8x64xf32>
    %3 = tpu.matmul %1, %2, %cst {dimension_numbers = #tpu.dot_dimension_numbers<[1], [0], [0], [1], [0, 0, 1, 1], [], []>} : vector<8x32xbf16>, vector<32x64xbf16>, vector<8x64xf32> -> vector<8x64xf32>
    %c0_3 = arith.constant 0 : index
    %c0_4 = arith.constant 0 : index
    %4 = vector.load %arg3[%c0_3, %c0_4] : memref<1x64xf32, #tpu.memory_space<vmem>>, vector<1x64xf32>
    %5 = vector.broadcast %4 : vector<1x64xf32> to vector<8x64xf32>
    %6 = arith.addf %3, %5 : vector<8x64xf32>
    %cst_5 = arith.constant 0.000000e+00 : f32
    %7 = vector.broadcast %cst_5 : f32 to vector<8x64xf32>
    %8 = arith.maximumf %6, %7 : vector<8x64xf32>
    %9 = arith.truncf %8 : vector<8x64xf32> to vector<8x64xbf16>
    %c0_6 = arith.constant 0 : index
    %c0_7 = arith.constant 0 : index
    %10 = vector.load %arg4[%c0_6, %c0_7] : memref<64x32xbf16, #tpu.memory_space<vmem>>, vector<64x32xbf16>
    %cst_8 = arith.constant dense<0.000000e+00> : vector<8x32xf32>
    %11 = tpu.matmul %9, %10, %cst_8 {dimension_numbers = #tpu.dot_dimension_numbers<[1], [0], [0], [1], [0, 0, 1, 1], [], []>} : vector<8x64xbf16>, vector<64x32xbf16>, vector<8x32xf32> -> vector<8x32xf32>
    %c0_9 = arith.constant 0 : index
    %c0_10 = arith.constant 0 : index
    %12 = vector.load %arg5[%c0_9, %c0_10] : memref<1x32xf32, #tpu.memory_space<vmem>>, vector<1x32xf32>
    %13 = vector.broadcast %12 : vector<1x32xf32> to vector<8x32xf32>
    %14 = arith.addf %11, %13 : vector<8x32xf32>
    %15 = arith.truncf %14 : vector<8x32xf32> to vector<8x32xbf16>
    %c0_11 = arith.constant 0 : index
    %c0_12 = arith.constant 0 : index
    %16 = vector.load %arg6[%c0_11, %c0_12] : memref<8x32xbf16, #tpu.memory_space<vmem>>, vector<8x32xbf16>
    tpu.vector_store %arg6[%c0_11, %c0_12], %15 {strides = array<i32>} : memref<8x32xbf16, #tpu.memory_space<vmem>>, vector<8x32xbf16>,
    return
  }
  func.func @transform_0(%arg0: i32) -> (i32, i32) {
    %c0_i32 = arith.constant 0 : i32
    %c0_i32_0 = arith.constant 0 : i32
    return %arg0, %c0_i32 : i32, i32
  }
  func.func @transform_1(%arg0: i32) -> (i32, i32) {
    %c0_i32 = arith.constant 0 : i32
    %c0_i32_0 = arith.constant 0 : i32
    %c0_i32_1 = arith.constant 0 : i32
    return %c0_i32, %c0_i32_0 : i32, i32
  }
  func.func @transform_2(%arg0: i32) -> (i32, i32) {
    %c0_i32 = arith.constant 0 : i32
    %c0_i32_0 = arith.constant 0 : i32
    %c0_i32_1 = arith.constant 0 : i32
    return %c0_i32, %c0_i32_0 : i32, i32
  }
  func.func @transform_3(%arg0: i32) -> (i32, i32) {
    %c0_i32 = arith.constant 0 : i32
    %c0_i32_0 = arith.constant 0 : i32
    %c0_i32_1 = arith.constant 0 : i32
    return %c0_i32, %c0_i32_0 : i32, i32
  }
  func.func @transform_4(%arg0: i32) -> (i32, i32) {
    %c0_i32 = arith.constant 0 : i32
    %c0_i32_0 = arith.constant 0 : i32
    %c0_i32_1 = arith.constant 0 : i32
    return %c0_i32, %c0_i32_0 : i32, i32
  }
  func.func @transform_5(%arg0: i32) -> (i32, i32) {
    %c0_i32 = arith.constant 0 : i32
    %c0_i32_0 = arith.constant 0 : i32
    return %arg0, %c0_i32 : i32, i32
  }
}

</mosaic_0001>

<llo_original>
// kernel: _lambda_.1
$region0: #{_lambda_.1}
  #allocation0 [shape = 'u32[]', space=smem, size = 0x4, offset = 0x4, fixed_abs, tag = 'smem constant byte address 0x4 - core index']
  #allocation1 [shape = 'u32[144,128]{1,0:T(1,128)}', space=vmem, size = 0x12000, scoped, tag = 'internal scratch']
  %s0 = inlined_call_operand.hbm [shape: f32[8,32], index: 0, kind: input, shape index: {}]
  %s1 = inlined_call_operand.vmem [shape: bf16[32,64], index: 1, kind: input, shape index: {}]
  %s2 = inlined_call_operand.vmem [shape: f32[1,64], index: 2, kind: input, shape index: {}]
  %s3 = inlined_call_operand.hbm [shape: bf16[64,32], index: 3, kind: input, shape index: {}]
  %s4 = inlined_call_operand.vmem [shape: f32[1,32], index: 4, kind: input, shape index: {}]
  %s5 = inlined_call_operand.hbm [shape: bf16[8,32], index: 5, kind: output, shape index: {}]
  %s6 = sld [smem:[#allocation0]]
  $region38: #{_lambda_.1} parent=0
    _
  %s8 = ssub.s32 1, %s6
  %s9 = scalar_select 0, %s8, %s6
  $region1: #{_lambda_.1} parent=0
    #allocation2 [shape = 'u8[4096]{0}', space=vmem, size = 0x1000, scoped, tag = 'input window, operand 0, single buffered']
    #allocation3 [shape = 's32[1]{0}', space=sflag, size = 0x4, scoped, tag = 'scoped memory for _lambda_.1']
    #allocation4 [shape = 's32[1]{0}', space=sflag, size = 0x4, scoped, tag = 'scoped memory for _lambda_.1']
    #allocation5 [shape = 'u8[16384]{0}', space=vmem, size = 0x4000, scoped, tag = 'input window, operand 3, single buffered']
    #allocation6 [shape = 's32[1]{0}', space=sflag, size = 0x4, scoped, tag = 'scoped memory for _lambda_.1']
    #allocation7 [shape = 'u8[2048]{0}', space=vmem, size = 0x800, scoped, tag = 'output window, operand 0, single buffered']
    %10 = vsyncpa [#allocation3], 0
    %11 = vsyncpa [#allocation6], 0
    %12 = vsyncpa [#allocation4], 0
    // Predicated region
    $region2: #{_lambda_.1} parent=1 // pred_check
      _
    $region3: #{_lambda_.1} parent=1 // pred_check_branch
      %14 = sbr.rel (0) target = $region5
    $region4: #{_lambda_.1} parent=1 // pred_region
      %s16 = ssub.s32 128, 128
      %17 = vsyncadd [#allocation3], %s16
      %s19 = sshll.u32 [#allocation2], 4
      %s20 = int_to_ptr.vmem [resolvable:$true] %s19
      %22 = dma.hbm_to_vmem [thread:$0]  %s0, 128, %s20, [#allocation3]
    $region5: #{_lambda_.1} parent=1 // pred_fallthru
      _
    // Predicated region
    $region6: #{_lambda_.1} parent=1 // pred_check
      _
    $region7: #{_lambda_.1} parent=1 // pred_check_branch
      %24 = sbr.rel (0) target = $region9
    $region8: #{_lambda_.1} parent=1 // pred_region
      _
    $region9: #{_lambda_.1} parent=1 // pred_fallthru
      _
    // Predicated region
    $region10: #{_lambda_.1} parent=1 // pred_check
      _
    $region11: #{_lambda_.1} parent=1 // pred_check_branch
      %26 = sbr.rel (0) target = $region13
    $region12: #{_lambda_.1} parent=1 // pred_region
      _
    $region13: #{_lambda_.1} parent=1 // pred_fallthru
      _
    // Predicated region
    $region14: #{_lambda_.1} parent=1 // pred_check
      _
    $region15: #{_lambda_.1} parent=1 // pred_check_branch
      %28 = sbr.rel (0) target = $region17
    $region16: #{_lambda_.1} parent=1 // pred_region
      %s30 = ssub.s32 512, 512
      %31 = vsyncadd [#allocation6], %s30
      %s32 = sshll.u32 [#allocation5], 4
      %s33 = int_to_ptr.vmem [resolvable:$true] %s32
      %38 = dma.hbm_to_vmem [thread:$0]  %s3, 512, %s33, [#allocation6], 64, 64, 4
    $region17: #{_lambda_.1} parent=1 // pred_fallthru
      _
    // Predicated region
    $region18: #{_lambda_.1} parent=1 // pred_check
      _
    $region19: #{_lambda_.1} parent=1 // pred_check_branch
      %40 = sbr.rel (0) target = $region21
    $region20: #{_lambda_.1} parent=1 // pred_region
      _
    $region21: #{_lambda_.1} parent=1 // pred_fallthru
      _
    // Predicated region
    $region22: #{_lambda_.1} parent=1 // pred_check
      _
    $region23: #{_lambda_.1} parent=1 // pred_check_branch
      %42 = sbr.rel (0) target = $region25
    $region24: #{_lambda_.1} parent=1 // pred_region
      %43 = dma.done [#allocation3], 128
    $region25: #{_lambda_.1} parent=1 // pred_fallthru
      _
    // Predicated region
    $region26: #{_lambda_.1} parent=1 // pred_check
      _
    $region27: #{_lambda_.1} parent=1 // pred_check_branch
      %45 = sbr.rel (0) target = $region29
    $region28: #{_lambda_.1} parent=1 // pred_region
      %46 = dma.done [#allocation6], 512
    $region29: #{_lambda_.1} parent=1 // pred_fallthru
      _
    %v48 = vld [vmem:[#allocation2] sm:$0xff]
    %v49 = vpack.c.bf16 %v48, %v48
    %v50 = vld [vmem:[%s1] sm:$0xf]
    %v51 = vld [vmem:[%s1 + $0x4] sm:$0xf]
    %v52 = vld [vmem:[%s1 + $0x8] sm:$0xf]
    %v53 = vld [vmem:[%s1 + $0xc] sm:$0xf]
    %v54 = vld [vmem:[%s2] sm:$0x1]
    %v56 = vlaneseq
    %v57 = vshrl.u32 %v56, 7
    %v58 = vsub.s32 0, %v57
    %v59 = vrot.slane %v54, %v58
    %v65 = vunpack.c.l.b16 %v50
    %v66 = vunpack.c.l.b16 %v51
    %v67 = vunpack.c.l.b16 %v52
    %v68 = vunpack.c.l.b16 %v53
    %v69 = vpack.c.b16 %v66, %v65
    %v70 = vpack.c.b16 %v68, %v67
    %vm73 = vcmask 261120
    %v75 = vsel %vm73, %v49, 0
    %77 = vmatprep.subr.bf16.mxu0 0
    %78 = vmatpush1.bf16.msra.mxu0 %v69
    %79 = vmatprep.subr.bf16.mxu0 0
    %80 = vmatpush1.bf16.msra.mxu0 %v70
    %81 = vmatprep.subr.bf16.mxu0 0
    %82 = vmatpush1.bf16.msra.mxu0 0
    %83 = vmatprep.subr.bf16.mxu0 0
    %84 = vmatpush1.bf16.msra.mxu0 0
    %85 = vmatprep.subr.bf16.mxu0 0
    %86 = vmatpush1.bf16.msra.mxu0 0
    %87 = vmatprep.subr.bf16.mxu0 0
    %88 = vmatpush1.bf16.msra.mxu0 0
    %89 = vmatprep.subr.bf16.mxu0 0
    %90 = vmatpush1.bf16.msra.mxu0 0
    %91 = vmatprep.subr.bf16.mxu0 0
    %92 = vmatpush1.bf16.msra.mxu0 0
    %93 = vmatprep.subr.bf16.mxu0 0
    %94 = vmatpush1.bf16.msra.mxu0 0
    %95 = vmatprep.subr.bf16.mxu0 0
    %96 = vmatpush1.bf16.msra.mxu0 0
    %97 = vmatprep.subr.bf16.mxu0 0
    %98 = vmatpush1.bf16.msra.mxu0 0
    %99 = vmatprep.subr.bf16.mxu0 0
    %100 = vmatpush1.bf16.msra.mxu0 0
    %101 = vmatprep.subr.bf16.mxu0 0
    %102 = vmatpush1.bf16.msra.mxu0 0
    %103 = vmatprep.subr.bf16.mxu0 0
    %104 = vmatpush1.bf16.msra.mxu0 0
    %105 = vmatprep.subr.bf16.mxu0 0
    %106 = vmatpush1.bf16.msra.mxu0 0
    %107 = vmatprep.subr.bf16.mxu0 0
    %108 = vmatpush1.bf16.msra.mxu0 0
    %109 = vmatprep.mubr.bf16.mxu0 0
    %110 = vmatmul.mubr.bf16.gmra.mrb[0].mxu0 %v75
    %v111 = vpop.f32.mrb[0].mxu0
    %v112 = vadd.f32 %v59, %v111
    %v113 = vpop.f32.mrb[0].mxu0
    %v114 = vpop.f32.mrb[0].mxu0
    %v115 = vpop.f32.mrb[0].mxu0
    %116 = vdwg.mxu0
    %v117 = vmax.f32 %v112, 0.0
    %v118 = vpack.c.bf16 %v117, %v117
    %v119 = vld [vmem:[#allocation5] sm:$0xf]
    %v120 = vld [vmem:[#allocation5 + $0x4] sm:$0xf]
    %v121 = vld [vmem:[#allocation5 + $0x8] sm:$0xf]
    %v122 = vld [vmem:[#allocation5 + $0xc] sm:$0xf]
    %v123 = vld [vmem:[#allocation5 + $0x10] sm:$0xf]
    %v124 = vld [vmem:[#allocation5 + $0x14] sm:$0xf]
    %v125 = vld [vmem:[#allocation5 + $0x18] sm:$0xf]
    %v126 = vld [vmem:[#allocation5 + $0x1c] sm:$0xf]
    %v127 = vld [vmem:[%s4] sm:$0x1]
    %v129 = vlaneseq
    %v130 = vshrl.u32 %v129, 7
    %v131 = vsub.s32 0, %v130
    %v132 = vrot.slane %v127, %v131
    %v142 = vunpack.c.l.b16 %v119
    %v143 = vunpack.c.l.b16 %v120
    %v144 = vunpack.c.l.b16 %v121
    %v145 = vunpack.c.l.b16 %v122
    %v146 = vunpack.c.l.b16 %v123
    %v147 = vunpack.c.l.b16 %v124
    %v148 = vunpack.c.l.b16 %v125
    %v149 = vunpack.c.l.b16 %v126
    %v150 = vpack.c.b16 %v143, %v142
    %v151 = vpack.c.b16 %v145, %v144
    %v152 = vpack.c.b16 %v147, %v146
    %v153 = vpack.c.b16 %v149, %v148
    %vm158 = vcmask 523264
    %v160 = vsel %vm158, %v118, 0
    %162 = vmatprep.subr.bf16.mxu0 0
    %163 = vmatpush1.bf16.msra.mxu0 %v150
    %164 = vmatprep.subr.bf16.mxu0 0
    %165 = vmatpush1.bf16.msra.mxu0 %v151
    %166 = vmatprep.subr.bf16.mxu0 0
    %167 = vmatpush1.bf16.msra.mxu0 %v152
    %168 = vmatprep.subr.bf16.mxu0 0
    %169 = vmatpush1.bf16.msra.mxu0 %v153
    %170 = vmatprep.subr.bf16.mxu0 0
    %171 = vmatpush1.bf16.msra.mxu0 0
    %172 = vmatprep.subr.bf16.mxu0 0
    %173 = vmatpush1.bf16.msra.mxu0 0
    %174 = vmatprep.subr.bf16.mxu0 0
    %175 = vmatpush1.bf16.msra.mxu0 0
    %176 = vmatprep.subr.bf16.mxu0 0
    %177 = vmatpush1.bf16.msra.mxu0 0
    %178 = vmatprep.subr.bf16.mxu0 0
    %179 = vmatpush1.bf16.msra.mxu0 0
    %180 = vmatprep.subr.bf16.mxu0 0
    %181 = vmatpush1.bf16.msra.mxu0 0
    %182 = vmatprep.subr.bf16.mxu0 0
    %183 = vmatpush1.bf16.msra.mxu0 0
    %184 = vmatprep.subr.bf16.mxu0 0
    %185 = vmatpush1.bf16.msra.mxu0 0
    %186 = vmatprep.subr.bf16.mxu0 0
    %187 = vmatpush1.bf16.msra.mxu0 0
    %188 = vmatprep.subr.bf16.mxu0 0
    %189 = vmatpush1.bf16.msra.mxu0 0
    %190 = vmatprep.subr.bf16.mxu0 0
    %191 = vmatpush1.bf16.msra.mxu0 0
    %192 = vmatprep.subr.bf16.mxu0 0
    %193 = vmatpush1.bf16.msra.mxu0 0
    %194 = vmatprep.mubr.bf16.mxu0 0
    %195 = vmatmul.mubr.bf16.gmra.mrb[0].mxu0 %v160
    %v196 = vpop.f32.mrb[0].mxu0
    %v197 = vadd.f32 %v132, %v196
    %v198 = vpop.f32.mrb[0].mxu0
    %v199 = vpop.f32.mrb[0].mxu0
    %v200 = vpop.f32.mrb[0].mxu0
    %201 = vdwg.mxu0
    %v202 = vpack.c.bf16 %v197, %v197
    %vm203 = vcmask 257024
    %204 = vst.msk [vmem:[#allocation7] sm:$0xf] %vm203, %v202
    // Predicated region
    $region30: #{_lambda_.1} parent=1 // pred_check
      _
    $region31: #{_lambda_.1} parent=1 // pred_check_branch
      %206 = sbr.rel (0) target = $region33
    $region32: #{_lambda_.1} parent=1 // pred_region
      %s208 = ssub.s32 64, 64
      %209 = vsyncadd [#allocation4], %s208
      %s211 = sshll.u32 [#allocation7], 4
      %s212 = int_to_ptr.vmem [resolvable:$true] %s211
      %214 = dma.vmem_to_hbm [thread:$0]  %s212, 64, %s5, [#allocation4]
    $region33: #{_lambda_.1} parent=1 // pred_fallthru
      _
    // Predicated region
    $region34: #{_lambda_.1} parent=1 // pred_check
      _
    $region35: #{_lambda_.1} parent=1 // pred_check_branch
      %216 = sbr.rel (0) target = $region37
    $region36: #{_lambda_.1} parent=1 // pred_region
      %217 = dma.done [#allocation4], 64
    $region37: #{_lambda_.1} parent=1 // pred_fallthru
      _
    %218 = vsyncpa [#allocation3], 1
    %219 = vsyncpa [#allocation6], 1
    %220 = vsyncpa [#allocation4], 1

</llo_original>
